<compile_context>
chip_gen: v6e
topology: v6e:2x2x1
jax: 0.10.0
libtpu: 0.0.40
codegen_flags: <defaults>
</compile_context>

<pallas_src>
import jax
import jax.numpy as jnp
from jax.experimental import pallas as pl
from jax.experimental.pallas import tpu as pltpu


_TARGET_BLOCK_BYTES = 8 * 1024 * 1024   # per-buffer block target (widest dtype)
_MIN_BLOCK_BYTES = 2 * 1024 * 1024      # below this on big tensors -> astype fallback
_VMEM_LIMIT_BYTES = 48 * 1024 * 1024    # 2x(8 MiB in + 8 MiB out) = 32 MiB worst case
_MIN_GRID = 4                           # aim for >= 4 steps on big tensors (megacore)


def _to_copy_kernel(x_ref, o_ref):
    # elementwise copy with dtype cast (VPU); purely HBM-bandwidth bound
    o_ref[...] = x_ref[...].astype(o_ref.dtype)


def _pack(dt):
    """Sublane packing factor (1 for >=32-bit, 2 for bf16/f16, 4 for int8/u8).

    NOTE: assumes the narrowest dtype is 8-bit; 4-bit dtypes (int4/fp4) would
    need a factor of 8 (64-row packed tile) -- not exercised here.
    """
    return max(1, 4 // jnp.dtype(dt).itemsize)


def _largest_divisor_leq(m, bound):
    """Largest divisor of m that is <= bound (m >= 1, bound >= 1)."""
    bound = min(bound, m)
    best = 1
    i = 1
    while i * i <= m:
        if m % i == 0:
            if i <= bound:
                best = max(best, i)
            j = m // i
            if j <= bound:
                best = max(best, j)
        i += 1
    return best


def _pick_lanes(n, sub):
    """Largest lane width <= 4096 that is a multiple of 128, divides n, and
    leaves a row count that is a multiple of the packed sublane tile."""
    for lanes in range(4096, 127, -128):
        if n % lanes == 0 and (n // lanes) % sub == 0:
            return lanes
    return None


def to_copy(x, dtype=None):
    """Pallas equivalent of torch.ops.aten._to_copy.default(x, dtype=dtype)."""
    in_dtype = jnp.dtype(x.dtype)
    out_dtype = jnp.dtype(in_dtype if dtype is None else dtype)
    orig_shape = x.shape
    n = x.size

    if n == 0:
        return jnp.zeros(orig_shape, out_dtype)

    # Native tile is (8, 128); sub-32-bit dtypes pack along sublanes, so align
    # rows to the packed tile of the *narrower* of the two dtypes.
    sub = 8 * max(_pack(in_dtype), _pack(out_dtype))
    max_item = max(in_dtype.itemsize, out_dtype.itemsize)
    total_bytes = n * max_item

    lanes = _pick_lanes(n, sub)
    if lanes is None:
        # No aligned lane-dense factorization exists: a plain XLA convert/copy
        # already runs at HBM roofline (1 read + 1 write), which beats any
        # pad + kernel + slice round trip (~3x traffic).
        return x.astype(out_dtype)

    rows = n // lanes

    # --- block size: ~8 MiB per buffer, a multiple of `sub` rows ---
    desired_rows = max(sub, (_TARGET_BLOCK_BYTES // (lanes * max_item)) // sub * sub)

    # Cap block_rows so big tensors get >= _MIN_GRID grid steps (keeps the
    # "parallel" axis shardable across both TensorCores on v7x) while never
    # forcing blocks below ~2 MiB.
    target_rows = desired_rows
    if total_bytes >= _MIN_GRID * _MIN_BLOCK_BYTES:
        cap_rows = max(sub, (rows // _MIN_GRID) // sub * sub)
        target_rows = min(desired_rows, cap_rows)

    # Snap block_rows to a divisor of rows so the grid has no tail block
    # (exact full-size blocks, no masked stores, no dropped rows).
    m = rows // sub
    block_rows = _largest_divisor_leq(m, max(1, target_rows // sub)) * sub
    block_bytes = block_rows * lanes * max_item

    if block_bytes < _MIN_BLOCK_BYTES and total_bytes > _MIN_GRID * _MIN_BLOCK_BYTES:
        # rows only has tiny divisors -> a huge grid of sub-roofline blocks;
        # the XLA convert/copy is faster.
        return x.astype(out_dtype)

    grid = (rows // block_rows,)
    x2d = x.reshape(rows, lanes)

    out2d = pl.pallas_call(
        _to_copy_kernel,
        out_shape=jax.ShapeDtypeStruct((rows, lanes), out_dtype),
        grid_spec=pltpu.PrefetchScalarGridSpec(
            num_scalar_prefetch=0,
            grid=grid,
            in_specs=[pl.BlockSpec((block_rows, lanes), lambda i: (i, 0))],
            out_specs=pl.BlockSpec((block_rows, lanes), lambda i: (i, 0)),
        ),
        compiler_params=pltpu.CompilerParams(
            dimension_semantics=("parallel",),
            vmem_limit_bytes=_VMEM_LIMIT_BYTES,
        ),
        cost_estimate=pl.CostEstimate(
            flops=0,
            transcendentals=0,
            bytes_accessed=n * (in_dtype.itemsize + out_dtype.itemsize),
        ),
    )(x2d)

    return out2d.reshape(orig_shape)


if __name__ == "__main__":
    key = jax.random.PRNGKey(0)
    # Small input consistent with the module (pure elementwise copy/cast).
    x = jax.random.normal(key, (2, 4, 16, 16), dtype=jnp.float32)

    # _to_copy with a dtype conversion (float32 -> bfloat16), the common case.
    y = to_copy(x, dtype=jnp.bfloat16)
    jax.block_until_ready(y)
    assert y.shape == x.shape, (y.shape, x.shape)
    assert y.dtype == jnp.bfloat16, y.dtype
    assert jnp.allclose(y.astype(jnp.float32), x, atol=1e-2, rtol=1e-2)

    # Identity copy path (no dtype arg) — exercises the lane-dense Pallas path.
    z = to_copy(x)
    jax.block_until_ready(z)
    assert z.dtype == x.dtype
    assert jnp.array_equal(z, x)

    # Ragged shape — exercises the XLA astype fallback (no pad/slice passes).
    x3 = jax.random.normal(jax.random.PRNGKey(1), (3, 5, 7), dtype=jnp.float32)
    w = to_copy(x3, dtype=jnp.bfloat16)
    jax.block_until_ready(w)
    assert w.shape == x3.shape and w.dtype == jnp.bfloat16
    assert jnp.allclose(w.astype(jnp.float32), x3, atol=1e-2, rtol=1e-2)

    # Medium tensor — exercises the multi-block, core-shardable grid path.
    x4 = jax.random.normal(jax.random.PRNGKey(2), (512, 4096), dtype=jnp.float32)
    v = to_copy(x4, dtype=jnp.bfloat16)
    jax.block_until_ready(v)
    assert v.shape == x4.shape and v.dtype == jnp.bfloat16
    assert jnp.allclose(v.astype(jnp.float32), x4, atol=1e-2, rtol=1e-2)

    print("KERNEL_OK")
</pallas_src>

<mosaic_0001>
module attributes {stable_mosaic.version = 11 : i64} {
  func.func @_to_copy_kernel(%arg0: i32, %arg1: memref<16x128xf32, #tpu.memory_space<vmem>>, %arg2: memref<16x128xbf16, #tpu.memory_space<vmem>>) attributes {dimension_semantics = [#tpu.dimension_semantics<parallel>], iteration_bounds = array<i64: 1>, scalar_prefetch = 0 : i64, scratch_operands = 0 : i64, tpu.core_type = #tpu.core_type<tc>, window_params = [{transform_indices = @transform_0, window_bounds = array<i64: 16, 128>}, {transform_indices = @transform_1, window_bounds = array<i64: 16, 128>}]} {
    %c0 = arith.constant 0 : index
    %c0_0 = arith.constant 0 : index
    %0 = vector.load %arg1[%c0, %c0_0] : memref<16x128xf32, #tpu.memory_space<vmem>>, vector<16x128xf32>
    %1 = arith.truncf %0 : vector<16x128xf32> to vector<16x128xbf16>
    %c0_1 = arith.constant 0 : index
    %c0_2 = arith.constant 0 : index
    %2 = vector.load %arg2[%c0_1, %c0_2] : memref<16x128xbf16, #tpu.memory_space<vmem>>, vector<16x128xbf16>
    tpu.vector_store %arg2[%c0_1, %c0_2], %1 {strides = array<i32>} : memref<16x128xbf16, #tpu.memory_space<vmem>>, vector<16x128xbf16>,
    return
  }
  func.func @transform_0(%arg0: i32) -> (i32, i32) {
    %c0_i32 = arith.constant 0 : i32
    %c0_i32_0 = arith.constant 0 : i32
    return %arg0, %c0_i32 : i32, i32
  }
  func.func @transform_1(%arg0: i32) -> (i32, i32) {
    %c0_i32 = arith.constant 0 : i32
    %c0_i32_0 = arith.constant 0 : i32
    return %arg0, %c0_i32 : i32, i32
  }
}

</mosaic_0001>

<llo_original>
// kernel: tpu_custom_call.1
$region0: #{tpu_custom_call.1}
  #allocation0 [shape = 'u32[]', space=smem, size = 0x4, offset = 0x4, fixed_abs, tag = 'smem constant byte address 0x4 - core index']
  #allocation1 [shape = 'u32[144,128]{1,0:T(1,128)}', space=vmem, size = 0x12000, scoped, tag = 'internal scratch']
  %s0 = inlined_call_operand.hbm [shape: f32[16,128], index: 0, kind: input, shape index: {}]
  %s1 = inlined_call_operand.hbm [shape: bf16[16,128], index: 1, kind: output, shape index: {}]
  %s2 = sld [smem:[#allocation0]]
  $region18: #{tpu_custom_call.1} parent=0
    _
  %s4 = ssub.s32 1, %s2
  %s5 = scalar_select 0, %s4, %s2
  $region1: #{tpu_custom_call.1} parent=0
    #allocation2 [shape = 'u8[8192]{0}', space=vmem, size = 0x2000, scoped, tag = 'input window, operand 0, single buffered']
    #allocation3 [shape = 's32[1]{0}', space=sflag, size = 0x4, scoped, tag = 'scoped memory for tpu_custom_call.1']
    #allocation4 [shape = 's32[1]{0}', space=sflag, size = 0x4, scoped, tag = 'scoped memory for tpu_custom_call.1']
    #allocation5 [shape = 'u8[4096]{0}', space=vmem, size = 0x1000, scoped, tag = 'output window, operand 0, single buffered']
    %6 = vsyncpa [#allocation3], 0
    %7 = vsyncpa [#allocation4], 0
    // Predicated region
    $region2: #{tpu_custom_call.1} parent=1 // pred_check
      _
    $region3: #{tpu_custom_call.1} parent=1 // pred_check_branch
      %9 = sbr.rel (0) target = $region5
    $region4: #{tpu_custom_call.1} parent=1 // pred_region
      %s11 = ssub.s32 256, 256
      %12 = vsyncadd [#allocation3], %s11
      %s13 = sshll.u32 [#allocation2], 4
      %s14 = int_to_ptr.vmem [resolvable:$true] %s13
      %19 = dma.hbm_to_vmem [thread:$0]  %s0, 256, %s14, [#allocation3], 128, 128, 8
    $region5: #{tpu_custom_call.1} parent=1 // pred_fallthru
      _
    // Predicated region
    $region6: #{tpu_custom_call.1} parent=1 // pred_check
      _
    $region7: #{tpu_custom_call.1} parent=1 // pred_check_branch
      %21 = sbr.rel (0) target = $region9
    $region8: #{tpu_custom_call.1} parent=1 // pred_region
      %22 = dma.done [#allocation3], 256
    $region9: #{tpu_custom_call.1} parent=1 // pred_fallthru
      _
    %v23 = vld [vmem:[#allocation2] sm:$0xff]
    %v24 = vld [vmem:[#allocation2 + $0x8] sm:$0xff]
    %v25 = vpack.c.bf16 %v24, %v23
    %v27 = vunpack.c.l.b16 %v25
    %v28 = vunpack.c.h.b16 %v25
    %v29 = vpack.c.b16 %v27, %v27
    %v30 = vpack.c.b16 %v28, %v28
    %33 = vst [vmem:[#allocation5] sm:$0xf] %v29
    %34 = vst [vmem:[#allocation5 + $0x4] sm:$0xf] %v30
    // Predicated region
    $region10: #{tpu_custom_call.1} parent=1 // pred_check
      _
    $region11: #{tpu_custom_call.1} parent=1 // pred_check_branch
      %36 = sbr.rel (0) target = $region13
    $region12: #{tpu_custom_call.1} parent=1 // pred_region
      %s38 = ssub.s32 128, 128
      %39 = vsyncadd [#allocation4], %s38
      %s40 = sshll.u32 [#allocation5], 4
      %s41 = int_to_ptr.vmem [resolvable:$true] %s40
      %46 = dma.vmem_to_hbm [thread:$0]  %s41, 128, %s1, [#allocation4], 64, 64, 4
    $region13: #{tpu_custom_call.1} parent=1 // pred_fallthru
      _
    // Predicated region
    $region14: #{tpu_custom_call.1} parent=1 // pred_check
      _
    $region15: #{tpu_custom_call.1} parent=1 // pred_check_branch
      %48 = sbr.rel (0) target = $region17
    $region16: #{tpu_custom_call.1} parent=1 // pred_region
      %49 = dma.done [#allocation4], 128
    $region17: #{tpu_custom_call.1} parent=1 // pred_fallthru
      _
    %50 = vsyncpa [#allocation3], 1
    %51 = vsyncpa [#allocation4], 1

</llo_original>
